<compile_context>
chip_gen: v7x
topology: tpu7x:2x2x1
jax: 0.10.0
libtpu: 0.0.40
codegen_flags: <defaults>
</compile_context>

<pallas_src>
import math

import jax
import jax.numpy as jnp
import numpy as np
from jax.experimental import pallas as pl
from jax.experimental.pallas import tpu as pltpu


_WIN = 10            # sliding-window length
_NPOS = 1280         # lane-aligned number of window-start positions evaluated (>= 1195)
_SPAD = _NPOS + 128  # padded query axis (1408 lanes): room for the window tail

# pltpu.roll is circular: wrap from a left-shift by up to _WIN-1 lands only at positions
# >= _SPAD-(_WIN-1); those must lie beyond the _NPOS positions the matmul consumes.
assert _SPAD - _NPOS >= _WIN - 1
assert _NPOS % 128 == 0 and _SPAD % 128 == 0


# ----------------------------------------------------------------------------
# Pallas kernel: fused sliding max-pool (roll tree) + residual MLP (per batch tile).
# ----------------------------------------------------------------------------
def _model_kernel(s_ref, wAg_ref, bA_ref, w1_ref, b1_ref, w2_ref, b2_ref,
                  wB_ref, bB_ref, wC_ref, bC_ref, out_ref):
    mm_dtype = wAg_ref.dtype

    # ---- width-10 sliding max: single load + log-tree of XLU rolls ---------------------
    # shl(a, j)[:, p] == a[:, (p + j) % _SPAD]  (== jnp.roll(a, -j, axis=1)).
    v = s_ref[...]                                          # (tb, _SPAD), one full load
    shl = lambda a, j: pltpu.roll(a, shift=_SPAD - j, axis=1)
    f2 = jnp.maximum(v, shl(v, 1))                          # max over [p, p+1]
    f4 = jnp.maximum(f2, shl(f2, 2))                        # width 4
    f8 = jnp.maximum(f4, shl(f4, 4))                        # width 8
    f10 = jnp.maximum(f8, shl(f2, 8))                       # width 10 = 8 + 2
    r = f10[:, :_NPOS]                                      # lane-aligned (tb, 1280) slice

    # fcA: window selection pre-scattered into wAg rows, b_step pre-folded into bA.
    h = jnp.dot(r.astype(mm_dtype), wAg_ref[...],
                preferred_element_type=jnp.float32) + bA_ref[...]
    h = jnp.maximum(h, 0.0)

    # residual block: Linear -> ReLU -> Linear, add skip, ReLU
    t = jnp.dot(h.astype(mm_dtype), w1_ref[...],
                preferred_element_type=jnp.float32) + b1_ref[...]
    t = jnp.maximum(t, 0.0)
    t = jnp.dot(t.astype(mm_dtype), w2_ref[...],
                preferred_element_type=jnp.float32) + b2_ref[...]
    h = jnp.maximum(h + t, 0.0)

    # fcB + ReLU (output padded to 128 lanes; pad columns stay exactly zero)
    h = jnp.dot(h.astype(mm_dtype), wB_ref[...],
                preferred_element_type=jnp.float32) + bB_ref[...]
    h = jnp.maximum(h, 0.0)

    # fcC (lane-dense (tb,128) store; real logits are columns 0:2)
    out_ref[...] = jnp.dot(h.astype(mm_dtype), wC_ref[...],
                           preferred_element_type=jnp.float32) + bC_ref[...]


# ----------------------------------------------------------------------------
# Parameter preparation (exact rewrites: scatter wA rows, fold b_step into bA,
# zero-pad wB/wC to lane-dense shapes, cast matmul operands to mm_dtype).
# ----------------------------------------------------------------------------
def _prepare_params(p, mm_dtype):
    wA = p["wA"]                                   # (600, 128), row k = 5*i + o
    # kernel position 10*i + o holds reference feature 5*i + o; all other rows are zero.
    wAg = wA.reshape(120, 5, 128)
    wAg = jnp.pad(wAg, ((0, 0), (0, _WIN - 5), (0, 0)))
    wAg = wAg.reshape(120 * _WIN, 128)
    wAg = jnp.pad(wAg, ((0, _NPOS - 120 * _WIN), (0, 0)))       # (1280, 128)
    # constant fc_step bias commutes with the max and with fcA: fold it in exactly.
    bAf = p["bA"] + p["b_step"][0, 0] * jnp.sum(wA, axis=0, keepdims=True)

    wBp = jnp.pad(p["wB"], ((0, 0), (0, 128 - 32)))             # (128, 128)
    bBp = jnp.pad(p["bB"], ((0, 0), (0, 128 - 32)))             # (1, 128)
    wCp = jnp.pad(p["wC"], ((0, 128 - 32), (0, 128 - 2)))       # (128, 128)
    bCp = jnp.pad(p["bC"], ((0, 0), (0, 128 - 2)))              # (1, 128)

    cast = lambda w: w.astype(mm_dtype)
    return (cast(wAg), bAf, cast(p["w1"]), p["b1"], cast(p["w2"]), p["b2"],
            cast(wBp), bBp, cast(wCp), bCp)


def _round_up(x, m):
    return (x + m - 1) // m * m


def _choose_batch_tile(b, batch_tile):
    tb = max(8, min(_round_up(batch_tile, 8), _round_up(b, 8)))
    # v7x has 2 TensorCores: make sure the "parallel" grid axis has >= 2 steps whenever
    # there is enough batch to split, so both cores get work.
    if _round_up(b, tb) // tb < 2 and _round_up(b, 8) >= 16:
        tb = _round_up(_round_up(b, 8) // 2, 8)
    return tb


# ----------------------------------------------------------------------------
# Wrapper: fc_step (tiny XLA contraction) + one batch-tiled pallas_call.
# ----------------------------------------------------------------------------
def residual_struct3_forward(x, p, *, batch_tile=256, matmul_dtype=jnp.bfloat16):
    b, qs, fd = x.shape
    assert fd == 7
    assert qs >= 1204, "all 5 offsets must yield 120 chunks (see NOTE on QS)"

    # fc_step without its bias (bias folded into bA): (B, 1204). Doing this before any
    # windowing keeps the kernel input at ~5.6 KB/sample instead of a 10x window gather.
    s = jnp.einsum("bqf,f->bq", x.astype(jnp.float32), p["w_step"][:, 0],
                   precision=jax.lax.Precision.HIGHEST)
    s = s[:, :1204]                                 # only the first 1204 positions matter

    tb = _choose_batch_tile(b, batch_tile)
    bpad = _round_up(b, tb)
    s = jnp.pad(s, ((0, bpad - b), (0, _SPAD - s.shape[1])))

    weights = _prepare_params(p, matmul_dtype)

    const = lambda i: (0, 0)                        # weights stay VMEM-resident
    out = pl.pallas_call(
        _model_kernel,
        out_shape=jax.ShapeDtypeStruct((bpad, 128), jnp.float32),
        grid=(bpad // tb,),
        in_specs=[
            pl.BlockSpec((tb, _SPAD), lambda i: (i, 0)),      # fc_step output slab
            pl.BlockSpec((_NPOS, 128), const),                # fcA weight (scattered rows)
            pl.BlockSpec((1, 128), const),                    # fcA bias (+ folded b_step)
            pl.BlockSpec((128, 128), const),                  # resblock fc1 W
            pl.BlockSpec((1, 128), const),                    # resblock fc1 b
            pl.BlockSpec((128, 128), const),                  # resblock fc2 W
            pl.BlockSpec((1, 128), const),                    # resblock fc2 b
            pl.BlockSpec((128, 128), const),                  # fcB W (zero-padded cols)
            pl.BlockSpec((1, 128), const),                    # fcB b (zero-padded)
            pl.BlockSpec((128, 128), const),                  # fcC W (zero-padded)
            pl.BlockSpec((1, 128), const),                    # fcC b (zero-padded)
        ],
        out_specs=pl.BlockSpec((tb, 128), lambda i: (i, 0)),  # lane-dense output block
        compiler_params=pltpu.CompilerParams(
            dimension_semantics=("parallel",),
            vmem_limit_bytes=32 * 1024 * 1024),
    )(s, *weights)
    return out[:b, :2]


# ----------------------------------------------------------------------------
# Deterministic parameter init (PyTorch-style U(-1/sqrt(fan_in), 1/sqrt(fan_in))).
# Weights are stored as (in, out) so the kernel computes x @ W directly.
# ----------------------------------------------------------------------------
def init_params(key):
    def linear(key, fan_in, fan_out):
        k1, k2 = jax.random.split(key)
        bound = 1.0 / math.sqrt(fan_in)
        w = jax.random.uniform(k1, (fan_in, fan_out), jnp.float32, -bound, bound)
        b = jax.random.uniform(k2, (1, fan_out), jnp.float32, -bound, bound)
        return w, b

    keys = jax.random.split(key, 6)
    w_step, b_step = linear(keys[0], 7, 1)       # fc_step
    wA, bA = linear(keys[1], 600, 128)           # fcA
    w1, b1 = linear(keys[2], 128, 128)           # resblock.fc1
    w2, b2 = linear(keys[3], 128, 128)           # resblock.fc2
    wB, bB = linear(keys[4], 128, 32)            # fcB
    wC, bC = linear(keys[5], 32, 2)              # fcC
    return dict(w_step=w_step, b_step=b_step, wA=wA, bA=bA,
                w1=w1, b1=b1, w2=w2, b2=b2, wB=wB, bB=bB, wC=wC, bC=bC)


# ----------------------------------------------------------------------------
# Pure-JAX reference mirroring the PyTorch forward literally (for verification).
# HIGHEST matmul precision so the f32 kernel path can be compared tightly.
# ----------------------------------------------------------------------------
def reference_forward(x, p):
    hp = jax.lax.Precision.HIGHEST
    mm = lambda a, w: jnp.matmul(a, w, precision=hp)
    b, qs, fd = x.shape
    s = jnp.einsum("bqf,fo->bqo", x, p["w_step"], precision=hp)[..., 0] + p["b_step"][0, 0]
    pools = []
    for offset in range(5):
        cols = []
        for i in range(120):
            start = offset + i * 10
            end = start + 10
            if end > qs:
                break
            cols.append(jnp.max(s[:, start:end], axis=1))
        pools.append(jnp.stack(cols, axis=1))
    cat3d = jnp.stack(pools, axis=2)                 # (B, 120, 5)
    cat2d = cat3d.reshape(b, 600)
    h = jnp.maximum(mm(cat2d, p["wA"]) + p["bA"], 0.0)
    r = jnp.maximum(mm(h, p["w1"]) + p["b1"], 0.0)
    r = mm(r, p["w2"]) + p["b2"]
    h = jnp.maximum(h + r, 0.0)
    h = jnp.maximum(mm(h, p["wB"]) + p["bB"], 0.0)
    return mm(h, p["wC"]) + p["bC"]


if __name__ == "__main__":
    key = jax.random.PRNGKey(0)
    kx, kp = jax.random.split(key)

    B, QS, FD = 2, 1204, 7          # qs must be >= 1204 (see NOTE on QS)
    x = jax.random.normal(kx, (B, QS, FD), dtype=jnp.float32)
    params = init_params(kp)

    ref = reference_forward(x, params)

    # Structurally-exact f32 matmul path.
    fwd_f32 = jax.jit(lambda a, p: residual_struct3_forward(a, p, matmul_dtype=jnp.float32))
    out_f32 = jax.block_until_ready(fwd_f32(x, params))
    np.testing.assert_allclose(np.asarray(out_f32), np.asarray(ref), rtol=5e-3, atol=5e-3)

    # Default bf16-operand MXU path (the perf target on v6e/v7x): looser tolerance.
    fwd_bf16 = jax.jit(lambda a, p: residual_struct3_forward(a, p, matmul_dtype=jnp.bfloat16))
    out_bf16 = jax.block_until_ready(fwd_bf16(x, params))
    np.testing.assert_allclose(np.asarray(out_bf16), np.asarray(ref), rtol=5e-2, atol=2e-2)

    print("KERNEL_OK")
</pallas_src>

<mosaic_0001>
module attributes {stable_mosaic.version = 11 : i64} {
  func.func @_model_kernel(%arg0: i32, %arg1: memref<8x1408xf32, #tpu.memory_space<vmem>>, %arg2: memref<1280x128xf32, #tpu.memory_space<vmem>>, %arg3: memref<1x128xf32, #tpu.memory_space<vmem>>, %arg4: memref<128x128xf32, #tpu.memory_space<vmem>>, %arg5: memref<1x128xf32, #tpu.memory_space<vmem>>, %arg6: memref<128x128xf32, #tpu.memory_space<vmem>>, %arg7: memref<1x128xf32, #tpu.memory_space<vmem>>, %arg8: memref<128x128xf32, #tpu.memory_space<vmem>>, %arg9: memref<1x128xf32, #tpu.memory_space<vmem>>, %arg10: memref<128x128xf32, #tpu.memory_space<vmem>>, %arg11: memref<1x128xf32, #tpu.memory_space<vmem>>, %arg12: memref<8x128xf32, #tpu.memory_space<vmem>>) attributes {dimension_semantics = [#tpu.dimension_semantics<parallel>], iteration_bounds = array<i64: 1>, scalar_prefetch = 0 : i64, scratch_operands = 0 : i64, tpu.core_type = #tpu.core_type<tc>, window_params = [{transform_indices = @transform_0, window_bounds = array<i64: 8, 1408>}, {pipeline_mode = #tpu.pipeline_mode<synchronous>, transform_indices = @transform_1, window_bounds = array<i64: 1280, 128>}, {pipeline_mode = #tpu.pipeline_mode<synchronous>, transform_indices = @transform_2, window_bounds = array<i64: 1, 128>}, {pipeline_mode = #tpu.pipeline_mode<synchronous>, transform_indices = @transform_3, window_bounds = array<i64: 128, 128>}, {pipeline_mode = #tpu.pipeline_mode<synchronous>, transform_indices = @transform_4, window_bounds = array<i64: 1, 128>}, {pipeline_mode = #tpu.pipeline_mode<synchronous>, transform_indices = @transform_5, window_bounds = array<i64: 128, 128>}, {pipeline_mode = #tpu.pipeline_mode<synchronous>, transform_indices = @transform_6, window_bounds = array<i64: 1, 128>}, {pipeline_mode = #tpu.pipeline_mode<synchronous>, transform_indices = @transform_7, window_bounds = array<i64: 128, 128>}, {pipeline_mode = #tpu.pipeline_mode<synchronous>, transform_indices = @transform_8, window_bounds = array<i64: 1, 128>}, {pipeline_mode = #tpu.pipeline_mode<synchronous>, transform_indices = @transform_9, window_bounds = array<i64: 128, 128>}, {pipeline_mode = #tpu.pipeline_mode<synchronous>, transform_indices = @transform_10, window_bounds = array<i64: 1, 128>}, {transform_indices = @transform_11, window_bounds = array<i64: 8, 128>}]} {
    %c0 = arith.constant 0 : index
    %c0_0 = arith.constant 0 : index
    %0 = vector.load %arg1[%c0, %c0_0] : memref<8x1408xf32, #tpu.memory_space<vmem>>, vector<8x1408xf32>
    %c1407_i32 = arith.constant 1407 : i32
    %1 = tpu.dynamic_rotate %0 by %c1407_i32 dim 1 : vector<8x1408xf32>, i32 -> vector<8x1408xf32>
    %2 = arith.maximumf %0, %1 : vector<8x1408xf32>
    %c1406_i32 = arith.constant 1406 : i32
    %3 = tpu.dynamic_rotate %2 by %c1406_i32 dim 1 : vector<8x1408xf32>, i32 -> vector<8x1408xf32>
    %4 = arith.maximumf %2, %3 : vector<8x1408xf32>
    %c1404_i32 = arith.constant 1404 : i32
    %5 = tpu.dynamic_rotate %4 by %c1404_i32 dim 1 : vector<8x1408xf32>, i32 -> vector<8x1408xf32>
    %6 = arith.maximumf %4, %5 : vector<8x1408xf32>
    %c1400_i32 = arith.constant 1400 : i32
    %7 = tpu.dynamic_rotate %2 by %c1400_i32 dim 1 : vector<8x1408xf32>, i32 -> vector<8x1408xf32>
    %8 = arith.maximumf %6, %7 : vector<8x1408xf32>
    %9 = vector.extract_strided_slice %8 {offsets = [0, 0], sizes = [8, 1280], strides = [1, 1]} : vector<8x1408xf32> to vector<8x1280xf32>
    %c0_1 = arith.constant 0 : index
    %c0_2 = arith.constant 0 : index
    %10 = vector.load %arg2[%c0_1, %c0_2] : memref<1280x128xf32, #tpu.memory_space<vmem>>, vector<1280x128xf32>
    %cst = arith.constant dense<0.000000e+00> : vector<8x128xf32>
    %11 = tpu.matmul %9, %10, %cst {dimension_numbers = #tpu.dot_dimension_numbers<[1], [0], [0], [1], [0, 0, 1, 1], [], []>} : vector<8x1280xf32>, vector<1280x128xf32>, vector<8x128xf32> -> vector<8x128xf32>
    %c0_3 = arith.constant 0 : index
    %c0_4 = arith.constant 0 : index
    %12 = vector.load %arg3[%c0_3, %c0_4] : memref<1x128xf32, #tpu.memory_space<vmem>>, vector<1x128xf32>
    %13 = vector.broadcast %12 : vector<1x128xf32> to vector<8x128xf32>
    %14 = arith.addf %11, %13 : vector<8x128xf32>
    %cst_5 = arith.constant 0.000000e+00 : f32
    %15 = vector.broadcast %cst_5 : f32 to vector<8x128xf32>
    %16 = arith.maximumf %14, %15 : vector<8x128xf32>
    %c0_6 = arith.constant 0 : index
    %c0_7 = arith.constant 0 : index
    %17 = vector.load %arg4[%c0_6, %c0_7] : memref<128x128xf32, #tpu.memory_space<vmem>>, vector<128x128xf32>
    %cst_8 = arith.constant dense<0.000000e+00> : vector<8x128xf32>
    %18 = tpu.matmul %16, %17, %cst_8 {dimension_numbers = #tpu.dot_dimension_numbers<[1], [0], [0], [1], [0, 0, 1, 1], [], []>} : vector<8x128xf32>, vector<128x128xf32>, vector<8x128xf32> -> vector<8x128xf32>
    %c0_9 = arith.constant 0 : index
    %c0_10 = arith.constant 0 : index
    %19 = vector.load %arg5[%c0_9, %c0_10] : memref<1x128xf32, #tpu.memory_space<vmem>>, vector<1x128xf32>
    %20 = vector.broadcast %19 : vector<1x128xf32> to vector<8x128xf32>
    %21 = arith.addf %18, %20 : vector<8x128xf32>
    %cst_11 = arith.constant 0.000000e+00 : f32
    %22 = vector.broadcast %cst_11 : f32 to vector<8x128xf32>
    %23 = arith.maximumf %21, %22 : vector<8x128xf32>
    %c0_12 = arith.constant 0 : index
    %c0_13 = arith.constant 0 : index
    %24 = vector.load %arg6[%c0_12, %c0_13] : memref<128x128xf32, #tpu.memory_space<vmem>>, vector<128x128xf32>
    %cst_14 = arith.constant dense<0.000000e+00> : vector<8x128xf32>
    %25 = tpu.matmul %23, %24, %cst_14 {dimension_numbers = #tpu.dot_dimension_numbers<[1], [0], [0], [1], [0, 0, 1, 1], [], []>} : vector<8x128xf32>, vector<128x128xf32>, vector<8x128xf32> -> vector<8x128xf32>
    %c0_15 = arith.constant 0 : index
    %c0_16 = arith.constant 0 : index
    %26 = vector.load %arg7[%c0_15, %c0_16] : memref<1x128xf32, #tpu.memory_space<vmem>>, vector<1x128xf32>
    %27 = vector.broadcast %26 : vector<1x128xf32> to vector<8x128xf32>
    %28 = arith.addf %25, %27 : vector<8x128xf32>
    %29 = arith.addf %16, %28 : vector<8x128xf32>
    %cst_17 = arith.constant 0.000000e+00 : f32
    %30 = vector.broadcast %cst_17 : f32 to vector<8x128xf32>
    %31 = arith.maximumf %29, %30 : vector<8x128xf32>
    %c0_18 = arith.constant 0 : index
    %c0_19 = arith.constant 0 : index
    %32 = vector.load %arg8[%c0_18, %c0_19] : memref<128x128xf32, #tpu.memory_space<vmem>>, vector<128x128xf32>
    %cst_20 = arith.constant dense<0.000000e+00> : vector<8x128xf32>
    %33 = tpu.matmul %31, %32, %cst_20 {dimension_numbers = #tpu.dot_dimension_numbers<[1], [0], [0], [1], [0, 0, 1, 1], [], []>} : vector<8x128xf32>, vector<128x128xf32>, vector<8x128xf32> -> vector<8x128xf32>
    %c0_21 = arith.constant 0 : index
    %c0_22 = arith.constant 0 : index
    %34 = vector.load %arg9[%c0_21, %c0_22] : memref<1x128xf32, #tpu.memory_space<vmem>>, vector<1x128xf32>
    %35 = vector.broadcast %34 : vector<1x128xf32> to vector<8x128xf32>
    %36 = arith.addf %33, %35 : vector<8x128xf32>
    %cst_23 = arith.constant 0.000000e+00 : f32
    %37 = vector.broadcast %cst_23 : f32 to vector<8x128xf32>
    %38 = arith.maximumf %36, %37 : vector<8x128xf32>
    %c0_24 = arith.constant 0 : index
    %c0_25 = arith.constant 0 : index
    %39 = vector.load %arg10[%c0_24, %c0_25] : memref<128x128xf32, #tpu.memory_space<vmem>>, vector<128x128xf32>
    %cst_26 = arith.constant dense<0.000000e+00> : vector<8x128xf32>
    %40 = tpu.matmul %38, %39, %cst_26 {dimension_numbers = #tpu.dot_dimension_numbers<[1], [0], [0], [1], [0, 0, 1, 1], [], []>} : vector<8x128xf32>, vector<128x128xf32>, vector<8x128xf32> -> vector<8x128xf32>
    %c0_27 = arith.constant 0 : index
    %c0_28 = arith.constant 0 : index
    %41 = vector.load %arg11[%c0_27, %c0_28] : memref<1x128xf32, #tpu.memory_space<vmem>>, vector<1x128xf32>
    %42 = vector.broadcast %41 : vector<1x128xf32> to vector<8x128xf32>
    %43 = arith.addf %40, %42 : vector<8x128xf32>
    %c0_29 = arith.constant 0 : index
    %c0_30 = arith.constant 0 : index
    %44 = vector.load %arg12[%c0_29, %c0_30] : memref<8x128xf32, #tpu.memory_space<vmem>>, vector<8x128xf32>
    tpu.vector_store %arg12[%c0_29, %c0_30], %43 {strides = array<i32>} : memref<8x128xf32, #tpu.memory_space<vmem>>, vector<8x128xf32>,
    return
  }
  func.func @transform_0(%arg0: i32) -> (i32, i32) {
    %c0_i32 = arith.constant 0 : i32
    %c0_i32_0 = arith.constant 0 : i32
    return %arg0, %c0_i32 : i32, i32
  }
  func.func @transform_1(%arg0: i32) -> (i32, i32) {
    %c0_i32 = arith.constant 0 : i32
    %c0_i32_0 = arith.constant 0 : i32
    %c0_i32_1 = arith.constant 0 : i32
    return %c0_i32, %c0_i32_0 : i32, i32
  }
  func.func @transform_2(%arg0: i32) -> (i32, i32) {
    %c0_i32 = arith.constant 0 : i32
    %c0_i32_0 = arith.constant 0 : i32
    %c0_i32_1 = arith.constant 0 : i32
    return %c0_i32, %c0_i32_0 : i32, i32
  }
  func.func @transform_3(%arg0: i32) -> (i32, i32) {
    %c0_i32 = arith.constant 0 : i32
    %c0_i32_0 = arith.constant 0 : i32
    %c0_i32_1 = arith.constant 0 : i32
    return %c0_i32, %c0_i32_0 : i32, i32
  }
  func.func @transform_4(%arg0: i32) -> (i32, i32) {
    %c0_i32 = arith.constant 0 : i32
    %c0_i32_0 = arith.constant 0 : i32
    %c0_i32_1 = arith.constant 0 : i32
    return %c0_i32, %c0_i32_0 : i32, i32
  }
  func.func @transform_5(%arg0: i32) -> (i32, i32) {
    %c0_i32 = arith.constant 0 : i32
    %c0_i32_0 = arith.constant 0 : i32
    %c0_i32_1 = arith.constant 0 : i32
    return %c0_i32, %c0_i32_0 : i32, i32
  }
  func.func @transform_6(%arg0: i32) -> (i32, i32) {
    %c0_i32 = arith.constant 0 : i32
    %c0_i32_0 = arith.constant 0 : i32
    %c0_i32_1 = arith.constant 0 : i32
    return %c0_i32, %c0_i32_0 : i32, i32
  }
  func.func @transform_7(%arg0: i32) -> (i32, i32) {
    %c0_i32 = arith.constant 0 : i32
    %c0_i32_0 = arith.constant 0 : i32
    %c0_i32_1 = arith.constant 0 : i32
    return %c0_i32, %c0_i32_0 : i32, i32
  }
  func.func @transform_8(%arg0: i32) -> (i32, i32) {
    %c0_i32 = arith.constant 0 : i32
    %c0_i32_0 = arith.constant 0 : i32
    %c0_i32_1 = arith.constant 0 : i32
    return %c0_i32, %c0_i32_0 : i32, i32
  }
  func.func @transform_9(%arg0: i32) -> (i32, i32) {
    %c0_i32 = arith.constant 0 : i32
    %c0_i32_0 = arith.constant 0 : i32
    %c0_i32_1 = arith.constant 0 : i32
    return %c0_i32, %c0_i32_0 : i32, i32
  }
  func.func @transform_10(%arg0: i32) -> (i32, i32) {
    %c0_i32 = arith.constant 0 : i32
    %c0_i32_0 = arith.constant 0 : i32
    %c0_i32_1 = arith.constant 0 : i32
    return %c0_i32, %c0_i32_0 : i32, i32
  }
  func.func @transform_11(%arg0: i32) -> (i32, i32) {
    %c0_i32 = arith.constant 0 : i32
    %c0_i32_0 = arith.constant 0 : i32
    return %arg0, %c0_i32 : i32, i32
  }
}

</mosaic_0001>

<llo_original>
// kernel: _lambda_.1
$region0: #{_lambda_.1}
  #allocation0 [shape = 'u32[]', space=smem, size = 0x4, offset = 0x4, fixed_abs, tag = 'smem constant byte address 0x4 - core index']
  #allocation1 [shape = 'u32[144,128]{1,0:T(1,128)}', space=vmem, size = 0x12000, scoped, tag = 'internal scratch']
  %s0 = inlined_call_operand.vmem [shape: f32[8,1408], index: 0, kind: input, shape index: {}]
  %s1 = inlined_call_operand.vmem [shape: f32[1280,128], index: 1, kind: input, shape index: {}]
  %s2 = inlined_call_operand.vmem [shape: f32[1,128], index: 2, kind: input, shape index: {}]
  %s3 = inlined_call_operand.vmem [shape: f32[128,128], index: 3, kind: input, shape index: {}]
  %s4 = inlined_call_operand.vmem [shape: f32[1,128], index: 4, kind: input, shape index: {}]
  %s5 = inlined_call_operand.vmem [shape: f32[128,128], index: 5, kind: input, shape index: {}]
  %s6 = inlined_call_operand.vmem [shape: f32[1,128], index: 6, kind: input, shape index: {}]
  %s7 = inlined_call_operand.vmem [shape: f32[128,128], index: 7, kind: input, shape index: {}]
  %s8 = inlined_call_operand.vmem [shape: f32[1,128], index: 8, kind: input, shape index: {}]
  %s9 = inlined_call_operand.vmem [shape: f32[128,128], index: 9, kind: input, shape index: {}]
  %s10 = inlined_call_operand.vmem [shape: f32[1,128], index: 10, kind: input, shape index: {}]
  %s11 = inlined_call_operand.vmem [shape: f32[8,128], index: 11, kind: output, shape index: {}]
  %s12 = sld [smem:[#allocation0]]
  $region54: #{_lambda_.1} parent=0
    _
  %s14 = ssub.s32 1, %s12
  %s15 = scalar_select 0, %s14, %s12
  // Predicated region
  $region2: #{_lambda_.1} parent=0 // pred_check
    _
  $region3: #{_lambda_.1} parent=0 // pred_check_branch
    %17 = sbr.rel (0) target = $region5
  $region4: #{_lambda_.1} parent=0 // pred_region
    _
  $region5: #{_lambda_.1} parent=0 // pred_fallthru
    _
  // Predicated region
  $region6: #{_lambda_.1} parent=0 // pred_check
    _
  $region7: #{_lambda_.1} parent=0 // pred_check_branch
    %19 = sbr.rel (0) target = $region9
  $region8: #{_lambda_.1} parent=0 // pred_region
    _
  $region9: #{_lambda_.1} parent=0 // pred_fallthru
    _
  // Predicated region
  $region10: #{_lambda_.1} parent=0 // pred_check
    _
  $region11: #{_lambda_.1} parent=0 // pred_check_branch
    %21 = sbr.rel (0) target = $region13
  $region12: #{_lambda_.1} parent=0 // pred_region
    _
  $region13: #{_lambda_.1} parent=0 // pred_fallthru
    _
  // Predicated region
  $region14: #{_lambda_.1} parent=0 // pred_check
    _
  $region15: #{_lambda_.1} parent=0 // pred_check_branch
    %23 = sbr.rel (0) target = $region17
  $region16: #{_lambda_.1} parent=0 // pred_region
    _
  $region17: #{_lambda_.1} parent=0 // pred_fallthru
    _
  // Predicated region
  $region18: #{_lambda_.1} parent=0 // pred_check
    _
  $region19: #{_lambda_.1} parent=0 // pred_check_branch
    %25 = sbr.rel (0) target = $region21
  $region20: #{_lambda_.1} parent=0 // pred_region
    _
  $region21: #{_lambda_.1} parent=0 // pred_fallthru
    _
  // Predicated region
  $region22: #{_lambda_.1} parent=0 // pred_check
    _
  $region23: #{_lambda_.1} parent=0 // pred_check_branch
    %27 = sbr.rel (0) target = $region25
  $region24: #{_lambda_.1} parent=0 // pred_region
    _
  $region25: #{_lambda_.1} parent=0 // pred_fallthru
    _
  // Predicated region
  $region26: #{_lambda_.1} parent=0 // pred_check
    _
  $region27: #{_lambda_.1} parent=0 // pred_check_branch
    %29 = sbr.rel (0) target = $region29
  $region28: #{_lambda_.1} parent=0 // pred_region
    _
  $region29: #{_lambda_.1} parent=0 // pred_fallthru
    _
  // Predicated region
  $region30: #{_lambda_.1} parent=0 // pred_check
    _
  $region31: #{_lambda_.1} parent=0 // pred_check_branch
    %31 = sbr.rel (0) target = $region33
  $region32: #{_lambda_.1} parent=0 // pred_region
    _
  $region33: #{_lambda_.1} parent=0 // pred_fallthru
    _
  // Predicated region
  $region34: #{_lambda_.1} parent=0 // pred_check
    _
  $region35: #{_lambda_.1} parent=0 // pred_check_branch
    %33 = sbr.rel (0) target = $region37
  $region36: #{_lambda_.1} parent=0 // pred_region
    _
  $region37: #{_lambda_.1} parent=0 // pred_fallthru
    _
  // Predicated region
  $region38: #{_lambda_.1} parent=0 // pred_check
    _
  $region39: #{_lambda_.1} parent=0 // pred_check_branch
    %35 = sbr.rel (0) target = $region41
  $region40: #{_lambda_.1} parent=0 // pred_region
    _
  $region41: #{_lambda_.1} parent=0 // pred_fallthru
    _
  // Predicated region
  $region42: #{_lambda_.1} parent=0 // pred_check
    _
  $region43: #{_lambda_.1} parent=0 // pred_check_branch
    %37 = sbr.rel (0) target = $region45
  $region44: #{_lambda_.1} parent=0 // pred_region
    _
  $region45: #{_lambda_.1} parent=0 // pred_fallthru
    _
  %v38 = vld [vmem:[%s0] sm:$0xff]
  %v39 = vld [vmem:[%s0 + $0x8] sm:$0xff]
  %v40 = vld [vmem:[%s0 + $0x10] sm:$0xff]
  %v41 = vld [vmem:[%s0 + $0x18] sm:$0xff]
  %v42 = vld [vmem:[%s0 + $0x20] sm:$0xff]
  %v43 = vld [vmem:[%s0 + $0x28] sm:$0xff]
  %v44 = vld [vmem:[%s0 + $0x30] sm:$0xff]
  %v45 = vld [vmem:[%s0 + $0x38] sm:$0xff]
  %v46 = vld [vmem:[%s0 + $0x40] sm:$0xff]
  %v47 = vld [vmem:[%s0 + $0x48] sm:$0xff]
  %v48 = vld [vmem:[%s0 + $0x50] sm:$0xff]
  %49 = vrot.lane.b32.xlu0 %v38, 127
  %v50 = vpop.permute.xlu0 %49
  %51 = vrot.lane.b32.xlu0 %v39, 127
  %v52 = vpop.permute.xlu0 %51
  %53 = vrot.lane.b32.xlu0 %v40, 127
  %v54 = vpop.permute.xlu0 %53
  %55 = vrot.lane.b32.xlu0 %v41, 127
  %v56 = vpop.permute.xlu0 %55
  %57 = vrot.lane.b32.xlu0 %v42, 127
  %v58 = vpop.permute.xlu0 %57
  %59 = vrot.lane.b32.xlu0 %v43, 127
  %v60 = vpop.permute.xlu0 %59
  %61 = vrot.lane.b32.xlu0 %v44, 127
  %v62 = vpop.permute.xlu0 %61
  %63 = vrot.lane.b32.xlu0 %v45, 127
  %v64 = vpop.permute.xlu0 %63
  %65 = vrot.lane.b32.xlu0 %v46, 127
  %v66 = vpop.permute.xlu0 %65
  %67 = vrot.lane.b32.xlu0 %v47, 127
  %v68 = vpop.permute.xlu0 %67
  %69 = vrot.lane.b32.xlu0 %v48, 127
  %v70 = vpop.permute.xlu0 %69
  %v71 = vlaneseq
  %v72 = vand.u32 %v71, 127
  %vm73 = vcmp.lt.s32.totalorder %v72, 127
  %v74 = vsel %vm73, %v68, %v70
  %v75 = vsel %vm73, %v66, %v68
  %v76 = vsel %vm73, %v64, %v66
  %v77 = vsel %vm73, %v62, %v64
  %v78 = vsel %vm73, %v60, %v62
  %v79 = vsel %vm73, %v58, %v60
  %v80 = vsel %vm73, %v56, %v58
  %v81 = vsel %vm73, %v54, %v56
  %v82 = vsel %vm73, %v52, %v54
  %v83 = vsel %vm73, %v50, %v52
  %v84 = vsel %vm73, %v70, %v50
  %v85 = vmax.f32 %v38, %v83
  %v86 = vmax.f32 %v39, %v82
  %v87 = vmax.f32 %v40, %v81
  %v88 = vmax.f32 %v41, %v80
  %v89 = vmax.f32 %v42, %v79
  %v90 = vmax.f32 %v43, %v78
  %v91 = vmax.f32 %v44, %v77
  %v92 = vmax.f32 %v45, %v76
  %v93 = vmax.f32 %v46, %v75
  %v94 = vmax.f32 %v47, %v74
  %v95 = vmax.f32 %v48, %v84
  %96 = vrot.lane.b32.xlu0 %v85, 126
  %v97 = vpop.permute.xlu0 %96
  %98 = vrot.lane.b32.xlu0 %v86, 126
  %v99 = vpop.permute.xlu0 %98
  %100 = vrot.lane.b32.xlu0 %v87, 126
  %v101 = vpop.permute.xlu0 %100
  %102 = vrot.lane.b32.xlu0 %v88, 126
  %v103 = vpop.permute.xlu0 %102
  %104 = vrot.lane.b32.xlu0 %v89, 126
  %v105 = vpop.permute.xlu0 %104
  %106 = vrot.lane.b32.xlu0 %v90, 126
  %v107 = vpop.permute.xlu0 %106
  %108 = vrot.lane.b32.xlu0 %v91, 126
  %v109 = vpop.permute.xlu0 %108
  %110 = vrot.lane.b32.xlu0 %v92, 126
  %v111 = vpop.permute.xlu0 %110
  %112 = vrot.lane.b32.xlu0 %v93, 126
  %v113 = vpop.permute.xlu0 %112
  %114 = vrot.lane.b32.xlu0 %v94, 126
  %v115 = vpop.permute.xlu0 %114
  %116 = vrot.lane.b32.xlu0 %v95, 126
  %v117 = vpop.permute.xlu0 %116
  %vm118 = vcmp.lt.s32.totalorder %v72, 126
  %v119 = vsel %vm118, %v115, %v117
  %v120 = vsel %vm118, %v113, %v115
  %v121 = vsel %vm118, %v111, %v113
  %v122 = vsel %vm118, %v109, %v111
  %v123 = vsel %vm118, %v107, %v109
  %v124 = vsel %vm118, %v105, %v107
  %v125 = vsel %vm118, %v103, %v105
  %v126 = vsel %vm118, %v101, %v103
  %v127 = vsel %vm118, %v99, %v101
  %v128 = vsel %vm118, %v97, %v99
  %v129 = vsel %vm118, %v117, %v97
  %v130 = vmax.f32 %v85, %v128
  %v131 = vmax.f32 %v86, %v127
  %v132 = vmax.f32 %v87, %v126
  %v133 = vmax.f32 %v88, %v125
  %v134 = vmax.f32 %v89, %v124
  %v135 = vmax.f32 %v90, %v123
  %v136 = vmax.f32 %v91, %v122
  %v137 = vmax.f32 %v92, %v121
  %v138 = vmax.f32 %v93, %v120
  %v139 = vmax.f32 %v94, %v119
  %v140 = vmax.f32 %v95, %v129
  %141 = vrot.lane.b32.xlu0 %v130, 124
  %v142 = vpop.permute.xlu0 %141
  %143 = vrot.lane.b32.xlu0 %v131, 124
  %v144 = vpop.permute.xlu0 %143
  %145 = vrot.lane.b32.xlu0 %v132, 124
  %v146 = vpop.permute.xlu0 %145
  %147 = vrot.lane.b32.xlu0 %v133, 124
  %v148 = vpop.permute.xlu0 %147
  %149 = vrot.lane.b32.xlu0 %v134, 124
  %v150 = vpop.permute.xlu0 %149
  %151 = vrot.lane.b32.xlu0 %v135, 124
  %v152 = vpop.permute.xlu0 %151
  %153 = vrot.lane.b32.xlu0 %v136, 124
  %v154 = vpop.permute.xlu0 %153
  %155 = vrot.lane.b32.xlu0 %v137, 124
  %v156 = vpop.permute.xlu0 %155
  %157 = vrot.lane.b32.xlu0 %v138, 124
  %v158 = vpop.permute.xlu0 %157
  %159 = vrot.lane.b32.xlu0 %v139, 124
  %v160 = vpop.permute.xlu0 %159
  %161 = vrot.lane.b32.xlu0 %v140, 124
  %v162 = vpop.permute.xlu0 %161
  %vm163 = vcmp.lt.s32.totalorder %v72, 124
  %v164 = vsel %vm163, %v160, %v162
  %v165 = vsel %vm163, %v158, %v160
  %v166 = vsel %vm163, %v156, %v158
  %v167 = vsel %vm163, %v154, %v156
  %v168 = vsel %vm163, %v152, %v154
  %v169 = vsel %vm163, %v150, %v152
  %v170 = vsel %vm163, %v148, %v150
  %v171 = vsel %vm163, %v146, %v148
  %v172 = vsel %vm163, %v144, %v146
  %v173 = vsel %vm163, %v142, %v144
  %v174 = vmax.f32 %v130, %v173
  %v175 = vmax.f32 %v131, %v172
  %v176 = vmax.f32 %v132, %v171
  %v177 = vmax.f32 %v133, %v170
  %v178 = vmax.f32 %v134, %v169
  %v179 = vmax.f32 %v135, %v168
  %v180 = vmax.f32 %v136, %v167
  %v181 = vmax.f32 %v137, %v166
  %v182 = vmax.f32 %v138, %v165
  %v183 = vmax.f32 %v139, %v164
  %184 = vrot.lane.b32.xlu0 %v85, 120
  %v185 = vpop.permute.xlu0 %184
  %186 = vrot.lane.b32.xlu0 %v86, 120
  %v187 = vpop.permute.xlu0 %186
  %188 = vrot.lane.b32.xlu0 %v87, 120
  %v189 = vpop.permute.xlu0 %188
  %190 = vrot.lane.b32.xlu0 %v88, 120
  %v191 = vpop.permute.xlu0 %190
  %192 = vrot.lane.b32.xlu0 %v89, 120
  %v193 = vpop.permute.xlu0 %192
  %194 = vrot.lane.b32.xlu0 %v90, 120
  %v195 = vpop.permute.xlu0 %194
  %196 = vrot.lane.b32.xlu0 %v91, 120
  %v197 = vpop.permute.xlu0 %196
  %198 = vrot.lane.b32.xlu0 %v92, 120
  %v199 = vpop.permute.xlu0 %198
  %200 = vrot.lane.b32.xlu0 %v93, 120
  %v201 = vpop.permute.xlu0 %200
  %202 = vrot.lane.b32.xlu0 %v94, 120
  %v203 = vpop.permute.xlu0 %202
  %204 = vrot.lane.b32.xlu0 %v95, 120
  %v205 = vpop.permute.xlu0 %204
  %vm206 = vcmp.lt.s32.totalorder %v72, 120
  %v207 = vsel %vm206, %v203, %v205
  %v208 = vsel %vm206, %v201, %v203
  %v209 = vsel %vm206, %v199, %v201
  %v210 = vsel %vm206, %v197, %v199
  %v211 = vsel %vm206, %v195, %v197
  %v212 = vsel %vm206, %v193, %v195
  %v213 = vsel %vm206, %v191, %v193
  %v214 = vsel %vm206, %v189, %v191
  %v215 = vsel %vm206, %v187, %v189
  %v216 = vsel %vm206, %v185, %v187
  %v217 = vmax.f32 %v174, %v216
  %v218 = vmax.f32 %v175, %v215
  %v219 = vmax.f32 %v176, %v214
  %v220 = vmax.f32 %v177, %v213
  %v221 = vmax.f32 %v178, %v212
  %v222 = vmax.f32 %v179, %v211
  %v223 = vmax.f32 %v180, %v210
  %v224 = vmax.f32 %v181, %v209
  %v225 = vmax.f32 %v182, %v208
  %v226 = vmax.f32 %v183, %v207
  %v227 = vld [vmem:[%s1] sm:$0xff]
  %v228 = vld [vmem:[%s1 + $0x8] sm:$0xff]
  %v229 = vld [vmem:[%s1 + $0x10] sm:$0xff]
  %v230 = vld [vmem:[%s1 + $0x18] sm:$0xff]
  %v231 = vld [vmem:[%s1 + $0x20] sm:$0xff]
  %v232 = vld [vmem:[%s1 + $0x28] sm:$0xff]
  %v233 = vld [vmem:[%s1 + $0x30] sm:$0xff]
  %v234 = vld [vmem:[%s1 + $0x38] sm:$0xff]
  %v235 = vld [vmem:[%s1 + $0x40] sm:$0xff]
  %v236 = vld [vmem:[%s1 + $0x48] sm:$0xff]
  %v237 = vld [vmem:[%s1 + $0x50] sm:$0xff]
  %v238 = vld [vmem:[%s1 + $0x58] sm:$0xff]
  %v239 = vld [vmem:[%s1 + $0x60] sm:$0xff]
  %v240 = vld [vmem:[%s1 + $0x68] sm:$0xff]
  %v241 = vld [vmem:[%s1 + $0x70] sm:$0xff]
  %v242 = vld [vmem:[%s1 + $0x78] sm:$0xff]
  %v243 = vld [vmem:[%s1 + $0x80] sm:$0xff]
  %v244 = vld [vmem:[%s1 + $0x88] sm:$0xff]
  %v245 = vld [vmem:[%s1 + $0x90] sm:$0xff]
  %v246 = vld [vmem:[%s1 + $0x98] sm:$0xff]
  %v247 = vld [vmem:[%s1 + $0xa0] sm:$0xff]
  %v248 = vld [vmem:[%s1 + $0xa8] sm:$0xff]
  %v249 = vld [vmem:[%s1 + $0xb0] sm:$0xff]
  %v250 = vld [vmem:[%s1 + $0xb8] sm:$0xff]
  %v251 = vld [vmem:[%s1 + $0xc0] sm:$0xff]
  %v252 = vld [vmem:[%s1 + $0xc8] sm:$0xff]
  %v253 = vld [vmem:[%s1 + $0xd0] sm:$0xff]
  %v254 = vld [vmem:[%s1 + $0xd8] sm:$0xff]
  %v255 = vld [vmem:[%s1 + $0xe0] sm:$0xff]
  %v256 = vld [vmem:[%s1 + $0xe8] sm:$0xff]
  %v257 = vld [vmem:[%s1 + $0xf0] sm:$0xff]
  %v258 = vld [vmem:[%s1 + $0xf8] sm:$0xff]
  %v259 = vld [vmem:[%s1 + $0x100] sm:$0xff]
  %v260 = vld [vmem:[%s1 + $0x108] sm:$0xff]
  %v261 = vld [vmem:[%s1 + $0x110] sm:$0xff]
  %v262 = vld [vmem:[%s1 + $0x118] sm:$0xff]
  %v263 = vld [vmem:[%s1 + $0x120] sm:$0xff]
  %v264 = vld [vmem:[%s1 + $0x128] sm:$0xff]
  %v265 = vld [vmem:[%s1 + $0x130] sm:$0xff]
  %v266 = vld [vmem:[%s1 + $0x138] sm:$0xff]
  %v267 = vld [vmem:[%s1 + $0x140] sm:$0xff]
  %v268 = vld [vmem:[%s1 + $0x148] sm:$0xff]
  %v269 = vld [vmem:[%s1 + $0x150] sm:$0xff]
  %v270 = vld [vmem:[%s1 + $0x158] sm:$0xff]
  %v271 = vld [vmem:[%s1 + $0x160] sm:$0xff]
  %v272 = vld [vmem:[%s1 + $0x168] sm:$0xff]
  %v273 = vld [vmem:[%s1 + $0x170] sm:$0xff]
  %v274 = vld [vmem:[%s1 + $0x178] sm:$0xff]
  %v275 = vld [vmem:[%s1 + $0x180] sm:$0xff]
  %v276 = vld [vmem:[%s1 + $0x188] sm:$0xff]
  %v277 = vld [vmem:[%s1 + $0x190] sm:$0xff]
  %v278 = vld [vmem:[%s1 + $0x198] sm:$0xff]
  %v279 = vld [vmem:[%s1 + $0x1a0] sm:$0xff]
  %v280 = vld [vmem:[%s1 + $0x1a8] sm:$0xff]
  %v281 = vld [vmem:[%s1 + $0x1b0] sm:$0xff]
  %v282 = vld [vmem:[%s1 + $0x1b8] sm:$0xff]
  %v283 = vld [vmem:[%s1 + $0x1c0] sm:$0xff]
  %v284 = vld [vmem:[%s1 + $0x1c8] sm:$0xff]
  %v285 = vld [vmem:[%s1 + $0x1d0] sm:$0xff]
  %v286 = vld [vmem:[%s1 + $0x1d8] sm:$0xff]
  %v287 = vld [vmem:[%s1 + $0x1e0] sm:$0xff]
  %v288 = vld [vmem:[%s1 + $0x1e8] sm:$0xff]
  %v289 = vld [vmem:[%s1 + $0x1f0] sm:$0xff]
  %v290 = vld [vmem:[%s1 + $0x1f8] sm:$0xff]
  %v291 = vld [vmem:[%s1 + $0x200] sm:$0xff]
  %v292 = vld [vmem:[%s1 + $0x208] sm:$0xff]
  %v293 = vld [vmem:[%s1 + $0x210] sm:$0xff]
  %v294 = vld [vmem:[%s1 + $0x218] sm:$0xff]
  %v295 = vld [vmem:[%s1 + $0x220] sm:$0xff]
  %v296 = vld [vmem:[%s1 + $0x228] sm:$0xff]
  %v297 = vld [vmem:[%s1 + $0x230] sm:$0xff]
  %v298 = vld [vmem:[%s1 + $0x238] sm:$0xff]
  %v299 = vld [vmem:[%s1 + $0x240] sm:$0xff]
  %v300 = vld [vmem:[%s1 + $0x248] sm:$0xff]
  %v301 = vld [vmem:[%s1 + $0x250] sm:$0xff]
  %v302 = vld [vmem:[%s1 + $0x258] sm:$0xff]
  %v303 = vld [vmem:[%s1 + $0x260] sm:$0xff]
  %v304 = vld [vmem:[%s1 + $0x268] sm:$0xff]
  %v305 = vld [vmem:[%s1 + $0x270] sm:$0xff]
  %v306 = vld [vmem:[%s1 + $0x278] sm:$0xff]
  %v307 = vld [vmem:[%s1 + $0x280] sm:$0xff]
  %v308 = vld [vmem:[%s1 + $0x288] sm:$0xff]
  %v309 = vld [vmem:[%s1 + $0x290] sm:$0xff]
  %v310 = vld [vmem:[%s1 + $0x298] sm:$0xff]
  %v311 = vld [vmem:[%s1 + $0x2a0] sm:$0xff]
  %v312 = vld [vmem:[%s1 + $0x2a8] sm:$0xff]
  %v313 = vld [vmem:[%s1 + $0x2b0] sm:$0xff]
  %v314 = vld [vmem:[%s1 + $0x2b8] sm:$0xff]
  %v315 = vld [vmem:[%s1 + $0x2c0] sm:$0xff]
  %v316 = vld [vmem:[%s1 + $0x2c8] sm:$0xff]
  %v317 = vld [vmem:[%s1 + $0x2d0] sm:$0xff]
  %v318 = vld [vmem:[%s1 + $0x2d8] sm:$0xff]
  %v319 = vld [vmem:[%s1 + $0x2e0] sm:$0xff]
  %v320 = vld [vmem:[%s1 + $0x2e8] sm:$0xff]
  %v321 = vld [vmem:[%s1 + $0x2f0] sm:$0xff]
  %v322 = vld [vmem:[%s1 + $0x2f8] sm:$0xff]
  %v323 = vld [vmem:[%s1 + $0x300] sm:$0xff]
  %v324 = vld [vmem:[%s1 + $0x308] sm:$0xff]
  %v325 = vld [vmem:[%s1 + $0x310] sm:$0xff]
  %v326 = vld [vmem:[%s1 + $0x318] sm:$0xff]
  %v327 = vld [vmem:[%s1 + $0x320] sm:$0xff]
  %v328 = vld [vmem:[%s1 + $0x328] sm:$0xff]
  %v329 = vld [vmem:[%s1 + $0x330] sm:$0xff]
  %v330 = vld [vmem:[%s1 + $0x338] sm:$0xff]
  %v331 = vld [vmem:[%s1 + $0x340] sm:$0xff]
  %v332 = vld [vmem:[%s1 + $0x348] sm:$0xff]
  %v333 = vld [vmem:[%s1 + $0x350] sm:$0xff]
  %v334 = vld [vmem:[%s1 + $0x358] sm:$0xff]
  %v335 = vld [vmem:[%s1 + $0x360] sm:$0xff]
  %v336 = vld [vmem:[%s1 + $0x368] sm:$0xff]
  %v337 = vld [vmem:[%s1 + $0x370] sm:$0xff]
  %v338 = vld [vmem:[%s1 + $0x378] sm:$0xff]
  %v339 = vld [vmem:[%s1 + $0x380] sm:$0xff]
  %v340 = vld [vmem:[%s1 + $0x388] sm:$0xff]
  %v341 = vld [vmem:[%s1 + $0x390] sm:$0xff]
  %v342 = vld [vmem:[%s1 + $0x398] sm:$0xff]
  %v343 = vld [vmem:[%s1 + $0x3a0] sm:$0xff]
  %v344 = vld [vmem:[%s1 + $0x3a8] sm:$0xff]
  %v345 = vld [vmem:[%s1 + $0x3b0] sm:$0xff]
  %v346 = vld [vmem:[%s1 + $0x3b8] sm:$0xff]
  %v347 = vld [vmem:[%s1 + $0x3c0] sm:$0xff]
  %v348 = vld [vmem:[%s1 + $0x3c8] sm:$0xff]
  %v349 = vld [vmem:[%s1 + $0x3d0] sm:$0xff]
  %v350 = vld [vmem:[%s1 + $0x3d8] sm:$0xff]
  %v351 = vld [vmem:[%s1 + $0x3e0] sm:$0xff]
  %v352 = vld [vmem:[%s1 + $0x3e8] sm:$0xff]
  %v353 = vld [vmem:[%s1 + $0x3f0] sm:$0xff]
  %v354 = vld [vmem:[%s1 + $0x3f8] sm:$0xff]
  %v355 = vld [vmem:[%s1 + $0x400] sm:$0xff]
  %v356 = vld [vmem:[%s1 + $0x408] sm:$0xff]
  %v357 = vld [vmem:[%s1 + $0x410] sm:$0xff]
  %v358 = vld [vmem:[%s1 + $0x418] sm:$0xff]
  %v359 = vld [vmem:[%s1 + $0x420] sm:$0xff]
  %v360 = vld [vmem:[%s1 + $0x428] sm:$0xff]
  %v361 = vld [vmem:[%s1 + $0x430] sm:$0xff]
  %v362 = vld [vmem:[%s1 + $0x438] sm:$0xff]
  %v363 = vld [vmem:[%s1 + $0x440] sm:$0xff]
  %v364 = vld [vmem:[%s1 + $0x448] sm:$0xff]
  %v365 = vld [vmem:[%s1 + $0x450] sm:$0xff]
  %v366 = vld [vmem:[%s1 + $0x458] sm:$0xff]
  %v367 = vld [vmem:[%s1 + $0x460] sm:$0xff]
  %v368 = vld [vmem:[%s1 + $0x468] sm:$0xff]
  %v369 = vld [vmem:[%s1 + $0x470] sm:$0xff]
  %v370 = vld [vmem:[%s1 + $0x478] sm:$0xff]
  %v371 = vld [vmem:[%s1 + $0x480] sm:$0xff]
  %v372 = vld [vmem:[%s1 + $0x488] sm:$0xff]
  %v373 = vld [vmem:[%s1 + $0x490] sm:$0xff]
  %v374 = vld [vmem:[%s1 + $0x498] sm:$0xff]
  %v375 = vld [vmem:[%s1 + $0x4a0] sm:$0xff]
  %v376 = vld [vmem:[%s1 + $0x4a8] sm:$0xff]
  %v377 = vld [vmem:[%s1 + $0x4b0] sm:$0xff]
  %v378 = vld [vmem:[%s1 + $0x4b8] sm:$0xff]
  %v379 = vld [vmem:[%s1 + $0x4c0] sm:$0xff]
  %v380 = vld [vmem:[%s1 + $0x4c8] sm:$0xff]
  %v381 = vld [vmem:[%s1 + $0x4d0] sm:$0xff]
  %v382 = vld [vmem:[%s1 + $0x4d8] sm:$0xff]
  %v383 = vld [vmem:[%s1 + $0x4e0] sm:$0xff]
  %v384 = vld [vmem:[%s1 + $0x4e8] sm:$0xff]
  %v385 = vld [vmem:[%s1 + $0x4f0] sm:$0xff]
  %v386 = vld [vmem:[%s1 + $0x4f8] sm:$0xff]
  %v387 = vld [vmem:[%s2] sm:$0x1]
  %v389 = vlaneseq
  %v390 = vshrl.u32 %v389, 7
  %v391 = vsub.s32 0, %v390
  %v392 = vrot.slane %v387, %v391
  %394 = vmatprep.subr.mxu0 0.0
  %395 = vmatpush1.msra.mxu0 %v227
  %396 = vmatprep.subr.mxu0 0.0
  %397 = vmatpush1.msra.mxu0 %v228
  %398 = vmatprep.subr.mxu0 0.0
  %399 = vmatpush1.msra.mxu0 %v229
  %400 = vmatprep.subr.mxu0 0.0
  %401 = vmatpush1.msra.mxu0 %v230
  %402 = vmatprep.subr.mxu0 0.0
  %403 = vmatpush1.msra.mxu0 %v231
  %404 = vmatprep.subr.mxu0 0.0
  %405 = vmatpush1.msra.mxu0 %v232
  %406 = vmatprep.subr.mxu0 0.0
  %407 = vmatpush1.msra.mxu0 %v233
  %408 = vmatprep.subr.mxu0 0.0
  %409 = vmatpush1.msra.mxu0 %v234
  %410 = vmatprep.subr.mxu0 0.0
  %411 = vmatpush1.msra.mxu0 %v235
  %412 = vmatprep.subr.mxu0 0.0
  %413 = vmatpush1.msra.mxu0 %v236
  %414 = vmatprep.subr.mxu0 0.0
  %415 = vmatpush1.msra.mxu0 %v237
  %416 = vmatprep.subr.mxu0 0.0
  %417 = vmatpush1.msra.mxu0 %v238
  %418 = vmatprep.subr.mxu0 0.0
  %419 = vmatpush1.msra.mxu0 %v239
  %420 = vmatprep.subr.mxu0 0.0
  %421 = vmatpush1.msra.mxu0 %v240
  %422 = vmatprep.subr.mxu0 0.0
  %423 = vmatpush1.msra.mxu0 %v241
  %424 = vmatprep.subr.mxu0 0.0
  %425 = vmatpush1.msra.mxu0 %v242
  %426 = vmatprep.subr.mxu0 0.0
  %427 = vmatpush1.msra.mxu0 %v243
  %428 = vmatprep.subr.mxu0 0.0
  %429 = vmatpush1.msra.mxu0 %v244
  %430 = vmatprep.subr.mxu0 0.0
  %431 = vmatpush1.msra.mxu0 %v245
  %432 = vmatprep.subr.mxu0 0.0
  %433 = vmatpush1.msra.mxu0 %v246
  %434 = vmatprep.subr.mxu0 0.0
  %435 = vmatpush1.msra.mxu0 %v247
  %436 = vmatprep.subr.mxu0 0.0
  %437 = vmatpush1.msra.mxu0 %v248
  %438 = vmatprep.subr.mxu0 0.0
  %439 = vmatpush1.msra.mxu0 %v249
  %440 = vmatprep.subr.mxu0 0.0
  %441 = vmatpush1.msra.mxu0 %v250
  %442 = vmatprep.subr.mxu0 0.0
  %443 = vmatpush1.msra.mxu0 %v251
  %444 = vmatprep.subr.mxu0 0.0
  %445 = vmatpush1.msra.mxu0 %v252
  %446 = vmatprep.subr.mxu0 0.0
  %447 = vmatpush1.msra.mxu0 %v253
  %448 = vmatprep.subr.mxu0 0.0
  %449 = vmatpush1.msra.mxu0 %v254
  %450 = vmatprep.subr.mxu0 0.0
  %451 = vmatpush1.msra.mxu0 %v255
  %452 = vmatprep.subr.mxu0 0.0
  %453 = vmatpush1.msra.mxu0 %v256
  %454 = vmatprep.subr.mxu0 0.0
  %455 = vmatpush1.msra.mxu0 %v257
  %456 = vmatprep.subr.mxu0 0.0
  %457 = vmatpush1.msra.mxu0 %v258
  %458 = vmatprep.mubr.f32.mxu0 %v218
  %459 = vmatmul.mubr.f32.gmra.mrb[0].mxu0 %v217
  %v460 = vpop.f32.mrb[0].mxu0
  %v461 = vadd.f32 %v392, %v460
  %v462 = vpop.f32.mrb[0].mxu0
  %463 = vdwg.mxu0
  %464 = vmatprep.subr.mxu0 0.0
  %465 = vmatpush1.msra.mxu0 %v259
  %466 = vmatprep.subr.mxu0 0.0
  %467 = vmatpush1.msra.mxu0 %v260
  %468 = vmatprep.subr.mxu0 0.0
  %469 = vmatpush1.msra.mxu0 %v261
  %470 = vmatprep.subr.mxu0 0.0
  %471 = vmatpush1.msra.mxu0 %v262
  %472 = vmatprep.subr.mxu0 0.0
  %473 = vmatpush1.msra.mxu0 %v263
  %474 = vmatprep.subr.mxu0 0.0
  %475 = vmatpush1.msra.mxu0 %v264
  %476 = vmatprep.subr.mxu0 0.0
  %477 = vmatpush1.msra.mxu0 %v265
  %478 = vmatprep.subr.mxu0 0.0
  %479 = vmatpush1.msra.mxu0 %v266
  %480 = vmatprep.subr.mxu0 0.0
  %481 = vmatpush1.msra.mxu0 %v267
  %482 = vmatprep.subr.mxu0 0.0
  %483 = vmatpush1.msra.mxu0 %v268
  %484 = vmatprep.subr.mxu0 0.0
  %485 = vmatpush1.msra.mxu0 %v269
  %486 = vmatprep.subr.mxu0 0.0
  %487 = vmatpush1.msra.mxu0 %v270
  %488 = vmatprep.subr.mxu0 0.0
  %489 = vmatpush1.msra.mxu0 %v271
  %490 = vmatprep.subr.mxu0 0.0
  %491 = vmatpush1.msra.mxu0 %v272
  %492 = vmatprep.subr.mxu0 0.0
  %493 = vmatpush1.msra.mxu0 %v273
  %494 = vmatprep.subr.mxu0 0.0
  %495 = vmatpush1.msra.mxu0 %v274
  %496 = vmatprep.subr.mxu0 0.0
  %497 = vmatpush1.msra.mxu0 %v275
  %498 = vmatprep.subr.mxu0 0.0
  %499 = vmatpush1.msra.mxu0 %v276
  %500 = vmatprep.subr.mxu0 0.0
  %501 = vmatpush1.msra.mxu0 %v277
  %502 = vmatprep.subr.mxu0 0.0
  %503 = vmatpush1.msra.mxu0 %v278
  %504 = vmatprep.subr.mxu0 0.0
  %505 = vmatpush1.msra.mxu0 %v279
  %506 = vmatprep.subr.mxu0 0.0
  %507 = vmatpush1.msra.mxu0 %v280
  %508 = vmatprep.subr.mxu0 0.0
  %509 = vmatpush1.msra.mxu0 %v281
  %510 = vmatprep.subr.mxu0 0.0
  %511 = vmatpush1.msra.mxu0 %v282
  %512 = vmatprep.subr.mxu0 0.0
  %513 = vmatpush1.msra.mxu0 %v283
  %514 = vmatprep.subr.mxu0 0.0
  %515 = vmatpush1.msra.mxu0 %v284
  %516 = vmatprep.subr.mxu0 0.0
  %517 = vmatpush1.msra.mxu0 %v285
  %518 = vmatprep.subr.mxu0 0.0
  %519 = vmatpush1.msra.mxu0 %v286
  %520 = vmatprep.subr.mxu0 0.0
  %521 = vmatpush1.msra.mxu0 %v287
  %522 = vmatprep.subr.mxu0 0.0
  %523 = vmatpush1.msra.mxu0 %v288
  %524 = vmatprep.subr.mxu0 0.0
  %525 = vmatpush1.msra.mxu0 %v289
  %526 = vmatprep.subr.mxu0 0.0
  %527 = vmatpush1.msra.mxu0 %v290
  %528 = vmatprep.mubr.f32.mxu0 %v220
  %529 = vmatmul.mubr.f32.gmra.mrb[0].mxu0 %v219
  %v530 = vpop.f32.mrb[0].mxu0
  %v531 = vadd.f32 %v461, %v530
  %v532 = vpop.f32.mrb[0].mxu0
  %533 = vdwg.mxu0
  %534 = vmatprep.subr.mxu0 0.0
  %535 = vmatpush1.msra.mxu0 %v291
  %536 = vmatprep.subr.mxu0 0.0
  %537 = vmatpush1.msra.mxu0 %v292
  %538 = vmatprep.subr.mxu0 0.0
  %539 = vmatpush1.msra.mxu0 %v293
  %540 = vmatprep.subr.mxu0 0.0
  %541 = vmatpush1.msra.mxu0 %v294
  %542 = vmatprep.subr.mxu0 0.0
  %543 = vmatpush1.msra.mxu0 %v295
  %544 = vmatprep.subr.mxu0 0.0
  %545 = vmatpush1.msra.mxu0 %v296
  %546 = vmatprep.subr.mxu0 0.0
  %547 = vmatpush1.msra.mxu0 %v297
  %548 = vmatprep.subr.mxu0 0.0
  %549 = vmatpush1.msra.mxu0 %v298
  %550 = vmatprep.subr.mxu0 0.0
  %551 = vmatpush1.msra.mxu0 %v299
  %552 = vmatprep.subr.mxu0 0.0
  %553 = vmatpush1.msra.mxu0 %v300
  %554 = vmatprep.subr.mxu0 0.0
  %555 = vmatpush1.msra.mxu0 %v301
  %556 = vmatprep.subr.mxu0 0.0
  %557 = vmatpush1.msra.mxu0 %v302
  %558 = vmatprep.subr.mxu0 0.0
  %559 = vmatpush1.msra.mxu0 %v303
  %560 = vmatprep.subr.mxu0 0.0
  %561 = vmatpush1.msra.mxu0 %v304
  %562 = vmatprep.subr.mxu0 0.0
  %563 = vmatpush1.msra.mxu0 %v305
  %564 = vmatprep.subr.mxu0 0.0
  %565 = vmatpush1.msra.mxu0 %v306
  %566 = vmatprep.subr.mxu0 0.0
  %567 = vmatpush1.msra.mxu0 %v307
  %568 = vmatprep.subr.mxu0 0.0
  %569 = vmatpush1.msra.mxu0 %v308
  %570 = vmatprep.subr.mxu0 0.0
  %571 = vmatpush1.msra.mxu0 %v309
  %572 = vmatprep.subr.mxu0 0.0
  %573 = vmatpush1.msra.mxu0 %v310
  %574 = vmatprep.subr.mxu0 0.0
  %575 = vmatpush1.msra.mxu0 %v311
  %576 = vmatprep.subr.mxu0 0.0
  %577 = vmatpush1.msra.mxu0 %v312
  %578 = vmatprep.subr.mxu0 0.0
  %579 = vmatpush1.msra.mxu0 %v313
  %580 = vmatprep.subr.mxu0 0.0
  %581 = vmatpush1.msra.mxu0 %v314
  %582 = vmatprep.subr.mxu0 0.0
  %583 = vmatpush1.msra.mxu0 %v315
  %584 = vmatprep.subr.mxu0 0.0
  %585 = vmatpush1.msra.mxu0 %v316
  %586 = vmatprep.subr.mxu0 0.0
  %587 = vmatpush1.msra.mxu0 %v317
  %588 = vmatprep.subr.mxu0 0.0
  %589 = vmatpush1.msra.mxu0 %v318
  %590 = vmatprep.subr.mxu0 0.0
  %591 = vmatpush1.msra.mxu0 %v319
  %592 = vmatprep.subr.mxu0 0.0
  %593 = vmatpush1.msra.mxu0 %v320
  %594 = vmatprep.subr.mxu0 0.0
  %595 = vmatpush1.msra.mxu0 %v321
  %596 = vmatprep.subr.mxu0 0.0
  %597 = vmatpush1.msra.mxu0 %v322
  %598 = vmatprep.mubr.f32.mxu0 %v222
  %599 = vmatmul.mubr.f32.gmra.mrb[0].mxu0 %v221
  %v600 = vpop.f32.mrb[0].mxu0
  %v601 = vadd.f32 %v531, %v600
  %v602 = vpop.f32.mrb[0].mxu0
  %603 = vdwg.mxu0
  %604 = vmatprep.subr.mxu0 0.0
  %605 = vmatpush1.msra.mxu0 %v323
  %606 = vmatprep.subr.mxu0 0.0
  %607 = vmatpush1.msra.mxu0 %v324
  %608 = vmatprep.subr.mxu0 0.0
  %609 = vmatpush1.msra.mxu0 %v325
  %610 = vmatprep.subr.mxu0 0.0
  %611 = vmatpush1.msra.mxu0 %v326
  %612 = vmatprep.subr.mxu0 0.0
  %613 = vmatpush1.msra.mxu0 %v327
  %614 = vmatprep.subr.mxu0 0.0
  %615 = vmatpush1.msra.mxu0 %v328
  %616 = vmatprep.subr.mxu0 0.0
  %617 = vmatpush1.msra.mxu0 %v329
  %618 = vmatprep.subr.mxu0 0.0
  %619 = vmatpush1.msra.mxu0 %v330
  %620 = vmatprep.subr.mxu0 0.0
  %621 = vmatpush1.msra.mxu0 %v331
  %622 = vmatprep.subr.mxu0 0.0
  %623 = vmatpush1.msra.mxu0 %v332
  %624 = vmatprep.subr.mxu0 0.0
  %625 = vmatpush1.msra.mxu0 %v333
  %626 = vmatprep.subr.mxu0 0.0
  %627 = vmatpush1.msra.mxu0 %v334
  %628 = vmatprep.subr.mxu0 0.0
  %629 = vmatpush1.msra.mxu0 %v335
  %630 = vmatprep.subr.mxu0 0.0
  %631 = vmatpush1.msra.mxu0 %v336
  %632 = vmatprep.subr.mxu0 0.0
  %633 = vmatpush1.msra.mxu0 %v337
  %634 = vmatprep.subr.mxu0 0.0
  %635 = vmatpush1.msra.mxu0 %v338
  %636 = vmatprep.subr.mxu0 0.0
  %637 = vmatpush1.msra.mxu0 %v339
  %638 = vmatprep.subr.mxu0 0.0
  %639 = vmatpush1.msra.mxu0 %v340
  %640 = vmatprep.subr.mxu0 0.0
  %641 = vmatpush1.msra.mxu0 %v341
  %642 = vmatprep.subr.mxu0 0.0
  %643 = vmatpush1.msra.mxu0 %v342
  %644 = vmatprep.subr.mxu0 0.0
  %645 = vmatpush1.msra.mxu0 %v343
  %646 = vmatprep.subr.mxu0 0.0
  %647 = vmatpush1.msra.mxu0 %v344
  %648 = vmatprep.subr.mxu0 0.0
  %649 = vmatpush1.msra.mxu0 %v345
  %650 = vmatprep.subr.mxu0 0.0
  %651 = vmatpush1.msra.mxu0 %v346
  %652 = vmatprep.subr.mxu0 0.0
  %653 = vmatpush1.msra.mxu0 %v347
  %654 = vmatprep.subr.mxu0 0.0
  %655 = vmatpush1.msra.mxu0 %v348
  %656 = vmatprep.subr.mxu0 0.0
  %657 = vmatpush1.msra.mxu0 %v349
  %658 = vmatprep.subr.mxu0 0.0
  %659 = vmatpush1.msra.mxu0 %v350
  %660 = vmatprep.subr.mxu0 0.0
  %661 = vmatpush1.msra.mxu0 %v351
  %662 = vmatprep.subr.mxu0 0.0
  %663 = vmatpush1.msra.mxu0 %v352
  %664 = vmatprep.subr.mxu0 0.0
  %665 = vmatpush1.msra.mxu0 %v353
  %666 = vmatprep.subr.mxu0 0.0
  %667 = vmatpush1.msra.mxu0 %v354
  %668 = vmatprep.mubr.f32.mxu0 %v224
  %669 = vmatmul.mubr.f32.gmra.mrb[0].mxu0 %v223
  %v670 = vpop.f32.mrb[0].mxu0
  %v671 = vadd.f32 %v601, %v670
  %v672 = vpop.f32.mrb[0].mxu0
  %673 = vdwg.mxu0
  %674 = vmatprep.subr.mxu0 0.0
  %675 = vmatpush1.msra.mxu0 %v355
  %676 = vmatprep.subr.mxu0 0.0
  %677 = vmatpush1.msra.mxu0 %v356
  %678 = vmatprep.subr.mxu0 0.0
  %679 = vmatpush1.msra.mxu0 %v357
  %680 = vmatprep.subr.mxu0 0.0
  %681 = vmatpush1.msra.mxu0 %v358
  %682 = vmatprep.subr.mxu0 0.0
  %683 = vmatpush1.msra.mxu0 %v359
  %684 = vmatprep.subr.mxu0 0.0
  %685 = vmatpush1.msra.mxu0 %v360
  %686 = vmatprep.subr.mxu0 0.0
  %687 = vmatpush1.msra.mxu0 %v361
  %688 = vmatprep.subr.mxu0 0.0
  %689 = vmatpush1.msra.mxu0 %v362
  %690 = vmatprep.subr.mxu0 0.0
  %691 = vmatpush1.msra.mxu0 %v363
  %692 = vmatprep.subr.mxu0 0.0
  %693 = vmatpush1.msra.mxu0 %v364
  %694 = vmatprep.subr.mxu0 0.0
  %695 = vmatpush1.msra.mxu0 %v365
  %696 = vmatprep.subr.mxu0 0.0
  %697 = vmatpush1.msra.mxu0 %v366
  %698 = vmatprep.subr.mxu0 0.0
  %699 = vmatpush1.msra.mxu0 %v367
  %700 = vmatprep.subr.mxu0 0.0
  %701 = vmatpush1.msra.mxu0 %v368
  %702 = vmatprep.subr.mxu0 0.0
  %703 = vmatpush1.msra.mxu0 %v369
  %704 = vmatprep.subr.mxu0 0.0
  %705 = vmatpush1.msra.mxu0 %v370
  %706 = vmatprep.subr.mxu0 0.0
  %707 = vmatpush1.msra.mxu0 %v371
  %708 = vmatprep.subr.mxu0 0.0
  %709 = vmatpush1.msra.mxu0 %v372
  %710 = vmatprep.subr.mxu0 0.0
  %711 = vmatpush1.msra.mxu0 %v373
  %712 = vmatprep.subr.mxu0 0.0
  %713 = vmatpush1.msra.mxu0 %v374
  %714 = vmatprep.subr.mxu0 0.0
  %715 = vmatpush1.msra.mxu0 %v375
  %716 = vmatprep.subr.mxu0 0.0
  %717 = vmatpush1.msra.mxu0 %v376
  %718 = vmatprep.subr.mxu0 0.0
  %719 = vmatpush1.msra.mxu0 %v377
  %720 = vmatprep.subr.mxu0 0.0
  %721 = vmatpush1.msra.mxu0 %v378
  %722 = vmatprep.subr.mxu0 0.0
  %723 = vmatpush1.msra.mxu0 %v379
  %724 = vmatprep.subr.mxu0 0.0
  %725 = vmatpush1.msra.mxu0 %v380
  %726 = vmatprep.subr.mxu0 0.0
  %727 = vmatpush1.msra.mxu0 %v381
  %728 = vmatprep.subr.mxu0 0.0
  %729 = vmatpush1.msra.mxu0 %v382
  %730 = vmatprep.subr.mxu0 0.0
  %731 = vmatpush1.msra.mxu0 %v383
  %732 = vmatprep.subr.mxu0 0.0
  %733 = vmatpush1.msra.mxu0 %v384
  %734 = vmatprep.subr.mxu0 0.0
  %735 = vmatpush1.msra.mxu0 %v385
  %736 = vmatprep.subr.mxu0 0.0
  %737 = vmatpush1.msra.mxu0 %v386
  %738 = vmatprep.mubr.f32.mxu0 %v226
  %739 = vmatmul.mubr.f32.gmra.mrb[0].mxu0 %v225
  %v740 = vpop.f32.mrb[0].mxu0
  %v741 = vadd.f32 %v671, %v740
  %v742 = vpop.f32.mrb[0].mxu0
  %743 = vdwg.mxu0
  %v744 = vmax.f32 %v741, 0.0
  %v745 = vld [vmem:[%s3] sm:$0xff]
  %v746 = vld [vmem:[%s3 + $0x8] sm:$0xff]
  %v747 = vld [vmem:[%s3 + $0x10] sm:$0xff]
  %v748 = vld [vmem:[%s3 + $0x18] sm:$0xff]
  %v749 = vld [vmem:[%s3 + $0x20] sm:$0xff]
  %v750 = vld [vmem:[%s3 + $0x28] sm:$0xff]
  %v751 = vld [vmem:[%s3 + $0x30] sm:$0xff]
  %v752 = vld [vmem:[%s3 + $0x38] sm:$0xff]
  %v753 = vld [vmem:[%s3 + $0x40] sm:$0xff]
  %v754 = vld [vmem:[%s3 + $0x48] sm:$0xff]
  %v755 = vld [vmem:[%s3 + $0x50] sm:$0xff]
  %v756 = vld [vmem:[%s3 + $0x58] sm:$0xff]
  %v757 = vld [vmem:[%s3 + $0x60] sm:$0xff]
  %v758 = vld [vmem:[%s3 + $0x68] sm:$0xff]
  %v759 = vld [vmem:[%s3 + $0x70] sm:$0xff]
  %v760 = vld [vmem:[%s3 + $0x78] sm:$0xff]
  %v761 = vld [vmem:[%s4] sm:$0x1]
  %v763 = vlaneseq
  %v764 = vshrl.u32 %v763, 7
  %v765 = vsub.s32 0, %v764
  %v766 = vrot.slane %v761, %v765
  %768 = vmatprep.subr.mxu0 0.0
  %769 = vmatpush1.msra.mxu0 %v745
  %770 = vmatprep.subr.mxu0 0.0
  %771 = vmatpush1.msra.mxu0 %v746
  %772 = vmatprep.subr.mxu0 0.0
  %773 = vmatpush1.msra.mxu0 %v747
  %774 = vmatprep.subr.mxu0 0.0
  %775 = vmatpush1.msra.mxu0 %v748
  %776 = vmatprep.subr.mxu0 0.0
  %777 = vmatpush1.msra.mxu0 %v749
  %778 = vmatprep.subr.mxu0 0.0
  %779 = vmatpush1.msra.mxu0 %v750
  %780 = vmatprep.subr.mxu0 0.0
  %781 = vmatpush1.msra.mxu0 %v751
  %782 = vmatprep.subr.mxu0 0.0
  %783 = vmatpush1.msra.mxu0 %v752
  %784 = vmatprep.subr.mxu0 0.0
  %785 = vmatpush1.msra.mxu0 %v753
  %786 = vmatprep.subr.mxu0 0.0
  %787 = vmatpush1.msra.mxu0 %v754
  %788 = vmatprep.subr.mxu0 0.0
  %789 = vmatpush1.msra.mxu0 %v755
  %790 = vmatprep.subr.mxu0 0.0
  %791 = vmatpush1.msra.mxu0 %v756
  %792 = vmatprep.subr.mxu0 0.0
  %793 = vmatpush1.msra.mxu0 %v757
  %794 = vmatprep.subr.mxu0 0.0
  %795 = vmatpush1.msra.mxu0 %v758
  %796 = vmatprep.subr.mxu0 0.0
  %797 = vmatpush1.msra.mxu0 %v759
  %798 = vmatprep.subr.mxu0 0.0
  %799 = vmatpush1.msra.mxu0 %v760
  %800 = vmatprep.subr.mxu0 0.0
  %801 = vmatpush1.msra.mxu0 0.0
  %802 = vmatprep.subr.mxu0 0.0
  %803 = vmatpush1.msra.mxu0 0.0
  %804 = vmatprep.subr.mxu0 0.0
  %805 = vmatpush1.msra.mxu0 0.0
  %806 = vmatprep.subr.mxu0 0.0
  %807 = vmatpush1.msra.mxu0 0.0
  %808 = vmatprep.subr.mxu0 0.0
  %809 = vmatpush1.msra.mxu0 0.0
  %810 = vmatprep.subr.mxu0 0.0
  %811 = vmatpush1.msra.mxu0 0.0
  %812 = vmatprep.subr.mxu0 0.0
  %813 = vmatpush1.msra.mxu0 0.0
  %814 = vmatprep.subr.mxu0 0.0
  %815 = vmatpush1.msra.mxu0 0.0
  %816 = vmatprep.subr.mxu0 0.0
  %817 = vmatpush1.msra.mxu0 0.0
  %818 = vmatprep.subr.mxu0 0.0
  %819 = vmatpush1.msra.mxu0 0.0
  %820 = vmatprep.subr.mxu0 0.0
  %821 = vmatpush1.msra.mxu0 0.0
  %822 = vmatprep.subr.mxu0 0.0
  %823 = vmatpush1.msra.mxu0 0.0
  %824 = vmatprep.subr.mxu0 0.0
  %825 = vmatpush1.msra.mxu0 0.0
  %826 = vmatprep.subr.mxu0 0.0
  %827 = vmatpush1.msra.mxu0 0.0
  %828 = vmatprep.subr.mxu0 0.0
  %829 = vmatpush1.msra.mxu0 0.0
  %830 = vmatprep.subr.mxu0 0.0
  %831 = vmatpush1.msra.mxu0 0.0
  %832 = vmatprep.mubr.f32.mxu0 0.0
  %833 = vmatmul.mubr.f32.gmra.mrb[0].mxu0 %v744
  %v834 = vpop.f32.mrb[0].mxu0
  %v835 = vadd.f32 %v766, %v834
  %v836 = vpop.f32.mrb[0].mxu0
  %837 = vdwg.mxu0
  %v838 = vmax.f32 %v835, 0.0
  %v839 = vld [vmem:[%s5] sm:$0xff]
  %v840 = vld [vmem:[%s5 + $0x8] sm:$0xff]
  %v841 = vld [vmem:[%s5 + $0x10] sm:$0xff]
  %v842 = vld [vmem:[%s5 + $0x18] sm:$0xff]
  %v843 = vld [vmem:[%s5 + $0x20] sm:$0xff]
  %v844 = vld [vmem:[%s5 + $0x28] sm:$0xff]
  %v845 = vld [vmem:[%s5 + $0x30] sm:$0xff]
  %v846 = vld [vmem:[%s5 + $0x38] sm:$0xff]
  %v847 = vld [vmem:[%s5 + $0x40] sm:$0xff]
  %v848 = vld [vmem:[%s5 + $0x48] sm:$0xff]
  %v849 = vld [vmem:[%s5 + $0x50] sm:$0xff]
  %v850 = vld [vmem:[%s5 + $0x58] sm:$0xff]
  %v851 = vld [vmem:[%s5 + $0x60] sm:$0xff]
  %v852 = vld [vmem:[%s5 + $0x68] sm:$0xff]
  %v853 = vld [vmem:[%s5 + $0x70] sm:$0xff]
  %v854 = vld [vmem:[%s5 + $0x78] sm:$0xff]
  %v855 = vld [vmem:[%s6] sm:$0x1]
  %v857 = vlaneseq
  %v858 = vshrl.u32 %v857, 7
  %v859 = vsub.s32 0, %v858
  %v860 = vrot.slane %v855, %v859
  %862 = vmatprep.subr.mxu0 0.0
  %863 = vmatpush1.msra.mxu0 %v839
  %864 = vmatprep.subr.mxu0 0.0
  %865 = vmatpush1.msra.mxu0 %v840
  %866 = vmatprep.subr.mxu0 0.0
  %867 = vmatpush1.msra.mxu0 %v841
  %868 = vmatprep.subr.mxu0 0.0
  %869 = vmatpush1.msra.mxu0 %v842
  %870 = vmatprep.subr.mxu0 0.0
  %871 = vmatpush1.msra.mxu0 %v843
  %872 = vmatprep.subr.mxu0 0.0
  %873 = vmatpush1.msra.mxu0 %v844
  %874 = vmatprep.subr.mxu0 0.0
  %875 = vmatpush1.msra.mxu0 %v845
  %876 = vmatprep.subr.mxu0 0.0
  %877 = vmatpush1.msra.mxu0 %v846
  %878 = vmatprep.subr.mxu0 0.0
  %879 = vmatpush1.msra.mxu0 %v847
  %880 = vmatprep.subr.mxu0 0.0
  %881 = vmatpush1.msra.mxu0 %v848
  %882 = vmatprep.subr.mxu0 0.0
  %883 = vmatpush1.msra.mxu0 %v849
  %884 = vmatprep.subr.mxu0 0.0
  %885 = vmatpush1.msra.mxu0 %v850
  %886 = vmatprep.subr.mxu0 0.0
  %887 = vmatpush1.msra.mxu0 %v851
  %888 = vmatprep.subr.mxu0 0.0
  %889 = vmatpush1.msra.mxu0 %v852
  %890 = vmatprep.subr.mxu0 0.0
  %891 = vmatpush1.msra.mxu0 %v853
  %892 = vmatprep.subr.mxu0 0.0
  %893 = vmatpush1.msra.mxu0 %v854
  %894 = vmatprep.subr.mxu0 0.0
  %895 = vmatpush1.msra.mxu0 0.0
  %896 = vmatprep.subr.mxu0 0.0
  %897 = vmatpush1.msra.mxu0 0.0
  %898 = vmatprep.subr.mxu0 0.0
  %899 = vmatpush1.msra.mxu0 0.0
  %900 = vmatprep.subr.mxu0 0.0
  %901 = vmatpush1.msra.mxu0 0.0
  %902 = vmatprep.subr.mxu0 0.0
  %903 = vmatpush1.msra.mxu0 0.0
  %904 = vmatprep.subr.mxu0 0.0
  %905 = vmatpush1.msra.mxu0 0.0
  %906 = vmatprep.subr.mxu0 0.0
  %907 = vmatpush1.msra.mxu0 0.0
  %908 = vmatprep.subr.mxu0 0.0
  %909 = vmatpush1.msra.mxu0 0.0
  %910 = vmatprep.subr.mxu0 0.0
  %911 = vmatpush1.msra.mxu0 0.0
  %912 = vmatprep.subr.mxu0 0.0
  %913 = vmatpush1.msra.mxu0 0.0
  %914 = vmatprep.subr.mxu0 0.0
  %915 = vmatpush1.msra.mxu0 0.0
  %916 = vmatprep.subr.mxu0 0.0
  %917 = vmatpush1.msra.mxu0 0.0
  %918 = vmatprep.subr.mxu0 0.0
  %919 = vmatpush1.msra.mxu0 0.0
  %920 = vmatprep.subr.mxu0 0.0
  %921 = vmatpush1.msra.mxu0 0.0
  %922 = vmatprep.subr.mxu0 0.0
  %923 = vmatpush1.msra.mxu0 0.0
  %924 = vmatprep.subr.mxu0 0.0
  %925 = vmatpush1.msra.mxu0 0.0
  %926 = vmatprep.mubr.f32.mxu0 0.0
  %927 = vmatmul.mubr.f32.gmra.mrb[0].mxu0 %v838
  %v928 = vpop.f32.mrb[0].mxu0
  %v929 = vadd.f32 %v860, %v928
  %v930 = vpop.f32.mrb[0].mxu0
  %931 = vdwg.mxu0
  %v932 = vadd.f32 %v744, %v929
  %v933 = vmax.f32 %v932, 0.0
  %v934 = vld [vmem:[%s7] sm:$0xff]
  %v935 = vld [vmem:[%s7 + $0x8] sm:$0xff]
  %v936 = vld [vmem:[%s7 + $0x10] sm:$0xff]
  %v937 = vld [vmem:[%s7 + $0x18] sm:$0xff]
  %v938 = vld [vmem:[%s7 + $0x20] sm:$0xff]
  %v939 = vld [vmem:[%s7 + $0x28] sm:$0xff]
  %v940 = vld [vmem:[%s7 + $0x30] sm:$0xff]
  %v941 = vld [vmem:[%s7 + $0x38] sm:$0xff]
  %v942 = vld [vmem:[%s7 + $0x40] sm:$0xff]
  %v943 = vld [vmem:[%s7 + $0x48] sm:$0xff]
  %v944 = vld [vmem:[%s7 + $0x50] sm:$0xff]
  %v945 = vld [vmem:[%s7 + $0x58] sm:$0xff]
  %v946 = vld [vmem:[%s7 + $0x60] sm:$0xff]
  %v947 = vld [vmem:[%s7 + $0x68] sm:$0xff]
  %v948 = vld [vmem:[%s7 + $0x70] sm:$0xff]
  %v949 = vld [vmem:[%s7 + $0x78] sm:$0xff]
  %v950 = vld [vmem:[%s8] sm:$0x1]
  %v952 = vlaneseq
  %v953 = vshrl.u32 %v952, 7
  %v954 = vsub.s32 0, %v953
  %v955 = vrot.slane %v950, %v954
  %957 = vmatprep.subr.mxu0 0.0
  %958 = vmatpush1.msra.mxu0 %v934
  %959 = vmatprep.subr.mxu0 0.0
  %960 = vmatpush1.msra.mxu0 %v935
  %961 = vmatprep.subr.mxu0 0.0
  %962 = vmatpush1.msra.mxu0 %v936
  %963 = vmatprep.subr.mxu0 0.0
  %964 = vmatpush1.msra.mxu0 %v937
  %965 = vmatprep.subr.mxu0 0.0
  %966 = vmatpush1.msra.mxu0 %v938
  %967 = vmatprep.subr.mxu0 0.0
  %968 = vmatpush1.msra.mxu0 %v939
  %969 = vmatprep.subr.mxu0 0.0
  %970 = vmatpush1.msra.mxu0 %v940
  %971 = vmatprep.subr.mxu0 0.0
  %972 = vmatpush1.msra.mxu0 %v941
  %973 = vmatprep.subr.mxu0 0.0
  %974 = vmatpush1.msra.mxu0 %v942
  %975 = vmatprep.subr.mxu0 0.0
  %976 = vmatpush1.msra.mxu0 %v943
  %977 = vmatprep.subr.mxu0 0.0
  %978 = vmatpush1.msra.mxu0 %v944
  %979 = vmatprep.subr.mxu0 0.0
  %980 = vmatpush1.msra.mxu0 %v945
  %981 = vmatprep.subr.mxu0 0.0
  %982 = vmatpush1.msra.mxu0 %v946
  %983 = vmatprep.subr.mxu0 0.0
  %984 = vmatpush1.msra.mxu0 %v947
  %985 = vmatprep.subr.mxu0 0.0
  %986 = vmatpush1.msra.mxu0 %v948
  %987 = vmatprep.subr.mxu0 0.0
  %988 = vmatpush1.msra.mxu0 %v949
  %989 = vmatprep.subr.mxu0 0.0
  %990 = vmatpush1.msra.mxu0 0.0
  %991 = vmatprep.subr.mxu0 0.0
  %992 = vmatpush1.msra.mxu0 0.0
  %993 = vmatprep.subr.mxu0 0.0
  %994 = vmatpush1.msra.mxu0 0.0
  %995 = vmatprep.subr.mxu0 0.0
  %996 = vmatpush1.msra.mxu0 0.0
  %997 = vmatprep.subr.mxu0 0.0
  %998 = vmatpush1.msra.mxu0 0.0
  %999 = vmatprep.subr.mxu0 0.0
  %1000 = vmatpush1.msra.mxu0 0.0
  %1001 = vmatprep.subr.mxu0 0.0
  %1002 = vmatpush1.msra.mxu0 0.0
  %1003 = vmatprep.subr.mxu0 0.0
  %1004 = vmatpush1.msra.mxu0 0.0
  %1005 = vmatprep.subr.mxu0 0.0
  %1006 = vmatpush1.msra.mxu0 0.0
  %1007 = vmatprep.subr.mxu0 0.0
  %1008 = vmatpush1.msra.mxu0 0.0
  %1009 = vmatprep.subr.mxu0 0.0
  %1010 = vmatpush1.msra.mxu0 0.0
  %1011 = vmatprep.subr.mxu0 0.0
  %1012 = vmatpush1.msra.mxu0 0.0
  %1013 = vmatprep.subr.mxu0 0.0
  %1014 = vmatpush1.msra.mxu0 0.0
  %1015 = vmatprep.subr.mxu0 0.0
  %1016 = vmatpush1.msra.mxu0 0.0
  %1017 = vmatprep.subr.mxu0 0.0
  %1018 = vmatpush1.msra.mxu0 0.0
  %1019 = vmatprep.subr.mxu0 0.0
  %1020 = vmatpush1.msra.mxu0 0.0
  %1021 = vmatprep.mubr.f32.mxu0 0.0
  %1022 = vmatmul.mubr.f32.gmra.mrb[0].mxu0 %v933
  %v1023 = vpop.f32.mrb[0].mxu0
  %v1024 = vadd.f32 %v955, %v1023
  %v1025 = vpop.f32.mrb[0].mxu0
  %1026 = vdwg.mxu0
  %v1027 = vmax.f32 %v1024, 0.0
  %v1028 = vld [vmem:[%s9] sm:$0xff]
  %v1029 = vld [vmem:[%s9 + $0x8] sm:$0xff]
  %v1030 = vld [vmem:[%s9 + $0x10] sm:$0xff]
  %v1031 = vld [vmem:[%s9 + $0x18] sm:$0xff]
  %v1032 = vld [vmem:[%s9 + $0x20] sm:$0xff]
  %v1033 = vld [vmem:[%s9 + $0x28] sm:$0xff]
  %v1034 = vld [vmem:[%s9 + $0x30] sm:$0xff]
  %v1035 = vld [vmem:[%s9 + $0x38] sm:$0xff]
  %v1036 = vld [vmem:[%s9 + $0x40] sm:$0xff]
  %v1037 = vld [vmem:[%s9 + $0x48] sm:$0xff]
  %v1038 = vld [vmem:[%s9 + $0x50] sm:$0xff]
  %v1039 = vld [vmem:[%s9 + $0x58] sm:$0xff]
  %v1040 = vld [vmem:[%s9 + $0x60] sm:$0xff]
  %v1041 = vld [vmem:[%s9 + $0x68] sm:$0xff]
  %v1042 = vld [vmem:[%s9 + $0x70] sm:$0xff]
  %v1043 = vld [vmem:[%s9 + $0x78] sm:$0xff]
  %v1044 = vld [vmem:[%s10] sm:$0x1]
  %v1046 = vlaneseq
  %v1047 = vshrl.u32 %v1046, 7
  %v1048 = vsub.s32 0, %v1047
  %v1049 = vrot.slane %v1044, %v1048
  %1051 = vmatprep.subr.mxu0 0.0
  %1052 = vmatpush1.msra.mxu0 %v1028
  %1053 = vmatprep.subr.mxu0 0.0
  %1054 = vmatpush1.msra.mxu0 %v1029
  %1055 = vmatprep.subr.mxu0 0.0
  %1056 = vmatpush1.msra.mxu0 %v1030
  %1057 = vmatprep.subr.mxu0 0.0
  %1058 = vmatpush1.msra.mxu0 %v1031
  %1059 = vmatprep.subr.mxu0 0.0
  %1060 = vmatpush1.msra.mxu0 %v1032
  %1061 = vmatprep.subr.mxu0 0.0
  %1062 = vmatpush1.msra.mxu0 %v1033
  %1063 = vmatprep.subr.mxu0 0.0
  %1064 = vmatpush1.msra.mxu0 %v1034
  %1065 = vmatprep.subr.mxu0 0.0
  %1066 = vmatpush1.msra.mxu0 %v1035
  %1067 = vmatprep.subr.mxu0 0.0
  %1068 = vmatpush1.msra.mxu0 %v1036
  %1069 = vmatprep.subr.mxu0 0.0
  %1070 = vmatpush1.msra.mxu0 %v1037
  %1071 = vmatprep.subr.mxu0 0.0
  %1072 = vmatpush1.msra.mxu0 %v1038
  %1073 = vmatprep.subr.mxu0 0.0
  %1074 = vmatpush1.msra.mxu0 %v1039
  %1075 = vmatprep.subr.mxu0 0.0
  %1076 = vmatpush1.msra.mxu0 %v1040
  %1077 = vmatprep.subr.mxu0 0.0
  %1078 = vmatpush1.msra.mxu0 %v1041
  %1079 = vmatprep.subr.mxu0 0.0
  %1080 = vmatpush1.msra.mxu0 %v1042
  %1081 = vmatprep.subr.mxu0 0.0
  %1082 = vmatpush1.msra.mxu0 %v1043
  %1083 = vmatprep.subr.mxu0 0.0
  %1084 = vmatpush1.msra.mxu0 0.0
  %1085 = vmatprep.subr.mxu0 0.0
  %1086 = vmatpush1.msra.mxu0 0.0
  %1087 = vmatprep.subr.mxu0 0.0
  %1088 = vmatpush1.msra.mxu0 0.0
  %1089 = vmatprep.subr.mxu0 0.0
  %1090 = vmatpush1.msra.mxu0 0.0
  %1091 = vmatprep.subr.mxu0 0.0
  %1092 = vmatpush1.msra.mxu0 0.0
  %1093 = vmatprep.subr.mxu0 0.0
  %1094 = vmatpush1.msra.mxu0 0.0
  %1095 = vmatprep.subr.mxu0 0.0
  %1096 = vmatpush1.msra.mxu0 0.0
  %1097 = vmatprep.subr.mxu0 0.0
  %1098 = vmatpush1.msra.mxu0 0.0
  %1099 = vmatprep.subr.mxu0 0.0
  %1100 = vmatpush1.msra.mxu0 0.0
  %1101 = vmatprep.subr.mxu0 0.0
  %1102 = vmatpush1.msra.mxu0 0.0
  %1103 = vmatprep.subr.mxu0 0.0
  %1104 = vmatpush1.msra.mxu0 0.0
  %1105 = vmatprep.subr.mxu0 0.0
  %1106 = vmatpush1.msra.mxu0 0.0
  %1107 = vmatprep.subr.mxu0 0.0
  %1108 = vmatpush1.msra.mxu0 0.0
  %1109 = vmatprep.subr.mxu0 0.0
  %1110 = vmatpush1.msra.mxu0 0.0
  %1111 = vmatprep.subr.mxu0 0.0
  %1112 = vmatpush1.msra.mxu0 0.0
  %1113 = vmatprep.subr.mxu0 0.0
  %1114 = vmatpush1.msra.mxu0 0.0
  %1115 = vmatprep.mubr.f32.mxu0 0.0
  %1116 = vmatmul.mubr.f32.gmra.mrb[0].mxu0 %v1027
  %v1117 = vpop.f32.mrb[0].mxu0
  %v1118 = vadd.f32 %v1049, %v1117
  %v1119 = vpop.f32.mrb[0].mxu0
  %1120 = vdwg.mxu0
  %1121 = vst [vmem:[%s11] sm:$0xff] %v1118
  // Predicated region
  $region46: #{_lambda_.1} parent=0 // pred_check
    _
  $region47: #{_lambda_.1} parent=0 // pred_check_branch
    %1123 = sbr.rel (0) target = $region49
  $region48: #{_lambda_.1} parent=0 // pred_region
    _
  $region49: #{_lambda_.1} parent=0 // pred_fallthru
    _
  // Predicated region
  $region50: #{_lambda_.1} parent=0 // pred_check
    _
  $region51: #{_lambda_.1} parent=0 // pred_check_branch
    %1125 = sbr.rel (0) target = $region53
  $region52: #{_lambda_.1} parent=0 // pred_region
    _
  $region53: #{_lambda_.1} parent=0 // pred_fallthru
    _

</llo_original>
